<compile_context>
chip_gen: v5e
topology: v5e:2x2
jax: 0.10.0
libtpu: 0.0.40
codegen_flags: <defaults>
</compile_context>

<pallas_src>
import functools
import numpy as np
import jax
import jax.numpy as jnp
from jax.experimental import pallas as pl
from jax.experimental.pallas import tpu as pltpu


# --------------------------------------------------------------------------
# Pallas kernel: fused block-diagonal SENNGC forward for one stacked model.
#   x_ref   : (1, Bp, K*nv)        flattened input windows
#   w1_ref  : (1, K*nv, K*H)       block-diag first Linear
#   b1_ref  : (1, 1, K*H)
#   wh_ref  : (1, L-1, K*H, K*H)   block-diag hidden Linears
#   bh_ref  : (1, L-1, 1, K*H)
#   wo_ref  : (1, K*H, K*nv^2)     block-diag output Linear
#   bo_ref  : (1, 1, K*nv^2)
#   rep_ref : (K*nv, K*nv^2)       constant 0/1 replication matrix
#   gsum_ref: (K*nv^2, nv)         constant 0/1 group-sum matrix
#   out_ref : (1, Bp, OUT_W)       [coeffs | preds | zero pad] lane-dense slab
# --------------------------------------------------------------------------
def senngc_kernel(x_ref, w1_ref, b1_ref, wh_ref, bh_ref, wo_ref, bo_ref,
                  rep_ref, gsum_ref, out_ref):
    x = x_ref[0]                                                    # (Bp, K*nv)

    h = jnp.dot(x, w1_ref[0], preferred_element_type=jnp.float32)
    h = jnp.maximum(h + b1_ref[0], 0.0)                             # (Bp, K*H)

    n_hh = wh_ref.shape[1]
    for j in range(n_hh):                                           # static unroll
        h = jnp.dot(h, wh_ref[0, j], preferred_element_type=jnp.float32)
        h = jnp.maximum(h + bh_ref[0, j], 0.0)

    c = jnp.dot(h, wo_ref[0], preferred_element_type=jnp.float32) + bo_ref[0]
    # c: (Bp, K*nv^2); c[:, k*nv^2 + i*nv + j] = coeff_k[b, i, j]

    # pred[b, i] = sum_k sum_j coeff_k[b, i, j] * x_k[b, j]
    x_rep = jnp.dot(x, rep_ref[...], preferred_element_type=jnp.float32)
    pred = jnp.dot(c * x_rep, gsum_ref[...],
                   preferred_element_type=jnp.float32)              # (Bp, nv)

    # Single lane-dense (128-wide) store: [coeffs | preds | zeros].
    pad = out_ref.shape[-1] - (c.shape[-1] + pred.shape[-1])
    parts = [c, pred]
    if pad > 0:
        parts.append(jnp.zeros((c.shape[0], pad), jnp.float32))
    out_ref[0] = jnp.concatenate(parts, axis=-1)


# --------------------------------------------------------------------------
# Host-side packing helpers.
# --------------------------------------------------------------------------
def _block_diag(ws):
    """ws: (K, a, b) -> (K*a, K*b) block-diagonal."""
    K, a, b = ws.shape
    eye = jnp.eye(K, dtype=ws.dtype)
    return jnp.einsum("kab,kl->kalb", ws, eye).reshape(K * a, K * b)


def pack_senngc_params(p):
    """Per-lag SENNGC params -> block-diagonal packed params."""
    K, nv, H = p["w1"].shape
    nv2 = nv * nv
    n_hh = p["wh"].shape[1]
    return dict(
        w1=_block_diag(p["w1"]),                                    # (K*nv, K*H)
        b1=p["b1"].reshape(1, K * H),
        wh=jnp.stack([_block_diag(p["wh"][:, j]) for j in range(n_hh)], 0),
        bh=jnp.transpose(p["bh"], (1, 0, 2, 3)).reshape(n_hh, 1, K * H),
        wo=_block_diag(p["wo"]),                                    # (K*H, K*nv2)
        bo=p["bo"].reshape(1, K * nv2),
    )


def stack_packed_params(packed_list):
    return {k: jnp.stack([p[k] for p in packed_list], 0)
            for k in packed_list[0]}


def make_selectors(K, nv):
    """Constant 0/1 matrices for replication and grouped lane reduction."""
    nv2 = nv * nv
    rep = np.zeros((K * nv, K * nv2), np.float32)
    gsum = np.zeros((K * nv2, nv), np.float32)
    for k in range(K):
        for i in range(nv):
            for j in range(nv):
                rep[k * nv + j, k * nv2 + i * nv + j] = 1.0
                gsum[k * nv2 + i * nv + j, i] = 1.0
    return jnp.asarray(rep), jnp.asarray(gsum)


# --------------------------------------------------------------------------
# Wrapper: S stacked SENNGC models, whole batch in one tile, grid=(S,).
# --------------------------------------------------------------------------
def senngc_forward_stacked(winds_s, packed_s, rep, gsum):
    """winds_s: (S, B, K, nv) -> preds (S, B, nv), coeffs (S, B, K, nv, nv)."""
    S, B, K, nv = winds_s.shape
    nv2 = nv * nv
    Knv, Knv2 = K * nv, K * nv2
    KH = packed_s["w1"].shape[-1]
    n_hh = packed_s["wh"].shape[1]
    out_w = ((Knv2 + nv + 127) // 128) * 128

    Bp = ((B + 7) // 8) * 8
    x = winds_s.reshape(S, B, Knv)
    x = jnp.pad(x, ((0, 0), (0, Bp - B), (0, 0)))

    slab = pl.pallas_call(
        senngc_kernel,
        out_shape=jax.ShapeDtypeStruct((S, Bp, out_w), jnp.float32),
        grid_spec=pltpu.PrefetchScalarGridSpec(
            num_scalar_prefetch=0,
            grid=(S,),
            in_specs=[
                pl.BlockSpec((1, Bp, Knv), lambda s: (s, 0, 0)),
                pl.BlockSpec((1, Knv, KH), lambda s: (s, 0, 0)),
                pl.BlockSpec((1, 1, KH), lambda s: (s, 0, 0)),
                pl.BlockSpec((1, n_hh, KH, KH), lambda s: (s, 0, 0, 0)),
                pl.BlockSpec((1, n_hh, 1, KH), lambda s: (s, 0, 0, 0)),
                pl.BlockSpec((1, KH, Knv2), lambda s: (s, 0, 0)),
                pl.BlockSpec((1, 1, Knv2), lambda s: (s, 0, 0)),
                pl.BlockSpec((Knv, Knv2), lambda s: (0, 0)),
                pl.BlockSpec((Knv2, nv), lambda s: (0, 0)),
            ],
            out_specs=pl.BlockSpec((1, Bp, out_w), lambda s: (s, 0, 0)),
        ),
        compiler_params=pltpu.CompilerParams(
            dimension_semantics=("parallel",)),
    )(x, packed_s["w1"], packed_s["b1"], packed_s["wh"], packed_s["bh"],
      packed_s["wo"], packed_s["bo"], rep, gsum)

    coeffs = slab[:, :B, :Knv2].reshape(S, B, K, nv, nv)
    preds = slab[:, :B, Knv2:Knv2 + nv]
    return preds, coeffs


# --------------------------------------------------------------------------
# AERCA forward (encoding -> KL -> decoding); glue in plain JAX.
# --------------------------------------------------------------------------
def compute_kl_divergence(us):
    # TODO(synk): utils.compute_kl_divergence source not shown; using the
    # standard per-variable KL( N(mu, std^2) || N(0, 1) ) averaged over vars,
    # with torch-style unbiased std.
    mu = jnp.mean(us, axis=0)
    var = jnp.var(us, axis=0, ddof=1)
    kl = -0.5 * (1.0 + jnp.log(var) - mu ** 2 - var)
    return jnp.mean(kl)


def sliding_windows(x, window_size):
    # x: (T, nv) -> (T - window_size, window_size + 1, nv)
    T = x.shape[0]
    n = T - window_size
    idx = jnp.arange(n)[:, None] + jnp.arange(window_size + 1)[None, :]
    return x[idx]


@functools.partial(jax.jit, static_argnames=("window_size", "add_u"))
def aerca_forward(x, enc_params, dec_params, dec_prev_params, window_size,
                  add_u=True):
    nv = x.shape[-1]
    rep, gsum = make_selectors(window_size, nv)

    enc_packed = stack_packed_params([pack_senngc_params(enc_params)])
    dec_packed = stack_packed_params([pack_senngc_params(dec_params),
                                      pack_senngc_params(dec_prev_params)])

    # ---- encoding ----
    windows = sliding_windows(x, window_size)             # (N, W+1, nv)
    winds = windows[:, :-1, :]                            # (N, W, nv)
    nexts = windows[:, -1, :]                             # (N, nv)

    enc_preds, enc_coeffs = senngc_forward_stacked(winds[None], enc_packed,
                                                   rep, gsum)
    enc_preds, encoder_coeffs = enc_preds[0], enc_coeffs[0]

    us = enc_preds - nexts                                # (N, nv)
    nexts_tr = nexts[window_size:]                        # (N - W, nv)
    winds_tr = winds[:-window_size]                       # (N - W, W, nv)

    kl_div = compute_kl_divergence(us)

    # ---- decoding (decoder + decoder_prev fused into one pallas_call) ----
    u_windows = sliding_windows(us, window_size)          # (N - W, W+1, nv)
    u_winds = u_windows[:, :-1, :]
    u_next = u_windows[:, -1, :]

    dec_inputs = jnp.stack([u_winds, winds_tr], axis=0)   # (2, M, W, nv)
    dec_preds2, dec_coeffs2 = senngc_forward_stacked(dec_inputs, dec_packed,
                                                     rep, gsum)
    dec_preds, prev_preds = dec_preds2[0], dec_preds2[1]
    decoder_coeffs, prev_coeffs = dec_coeffs2[0], dec_coeffs2[1]

    if add_u:
        nexts_hat = dec_preds + u_next + prev_preds
    else:
        nexts_hat = dec_preds + prev_preds

    return (nexts_hat, nexts_tr, encoder_coeffs, decoder_coeffs,
            prev_coeffs, kl_div, us)


# --------------------------------------------------------------------------
# Pure-JAX reference SENNGC (per-lag) for correctness checking.
# --------------------------------------------------------------------------
def senngc_ref(winds, p):
    B, K, nv = winds.shape
    n_hh = p["wh"].shape[1]
    hp = jax.lax.Precision.HIGHEST
    preds = jnp.zeros((B, nv), jnp.float32)
    coeffs = []
    for k in range(K):
        xk = winds[:, k, :]
        h = jnp.maximum(jnp.dot(xk, p["w1"][k], precision=hp) + p["b1"][k], 0.0)
        for j in range(n_hh):
            h = jnp.maximum(jnp.dot(h, p["wh"][k, j], precision=hp)
                            + p["bh"][k, j], 0.0)
        c = jnp.dot(h, p["wo"][k], precision=hp) + p["bo"][k]
        ck = c.reshape(B, nv, nv)
        coeffs.append(ck)
        preds = preds + jnp.einsum("bij,bj->bi", ck, xk, precision=hp)
    return preds, jnp.stack(coeffs, axis=1)


# --------------------------------------------------------------------------
# Deterministic parameter init (synthetic; shapes follow SENNGC __init__:
# per lag: Linear(nv->H)+ReLU, (L-1) x [Linear(H->H)+ReLU], Linear(H->nv^2)).
# Weights stored as (in, out) so the kernel uses y = x @ W + b.
# --------------------------------------------------------------------------
def init_senngc_params(key, num_vars, order, hidden, num_hidden_layers):
    assert num_hidden_layers >= 2
    nv2 = num_vars * num_vars
    ks = jax.random.split(key, 6)

    def unif(k, shape, fan_in):
        bound = 1.0 / np.sqrt(fan_in)
        return jax.random.uniform(k, shape, jnp.float32, -bound, bound)

    return dict(
        w1=unif(ks[0], (order, num_vars, hidden), num_vars),
        b1=unif(ks[1], (order, 1, hidden), num_vars),
        wh=unif(ks[2], (order, num_hidden_layers - 1, hidden, hidden), hidden),
        bh=unif(ks[3], (order, num_hidden_layers - 1, 1, hidden), hidden),
        wo=unif(ks[4], (order, hidden, nv2), hidden),
        bo=unif(ks[5], (order, 1, nv2), hidden),
    )


if __name__ == "__main__":
    NUM_VARS = 4
    HIDDEN = 32
    NUM_HIDDEN_LAYERS = 2
    WINDOW = 4
    T = 44                      # -> N = 40 encoder windows, M = 36 decoder windows

    key = jax.random.PRNGKey(0)
    k_x, k_e, k_d, k_p = jax.random.split(key, 4)

    x = jax.random.normal(k_x, (T, NUM_VARS), jnp.float32)
    enc_params = init_senngc_params(k_e, NUM_VARS, WINDOW, HIDDEN, NUM_HIDDEN_LAYERS)
    dec_params = init_senngc_params(k_d, NUM_VARS, WINDOW, HIDDEN, NUM_HIDDEN_LAYERS)
    dec_prev_params = init_senngc_params(k_p, NUM_VARS, WINDOW, HIDDEN, NUM_HIDDEN_LAYERS)

    # --- correctness spot-check: fused block-diag kernel vs per-lag reference ---
    windows = sliding_windows(x, WINDOW)
    winds = windows[:, :-1, :]
    rep, gsum = make_selectors(WINDOW, NUM_VARS)
    enc_packed = stack_packed_params([pack_senngc_params(enc_params)])
    preds_k, coeffs_k = senngc_forward_stacked(winds[None], enc_packed, rep, gsum)
    preds_r, coeffs_r = senngc_ref(winds, enc_params)
    np.testing.assert_allclose(np.asarray(preds_k[0]), np.asarray(preds_r),
                               rtol=1e-2, atol=1e-2)
    np.testing.assert_allclose(np.asarray(coeffs_k[0]), np.asarray(coeffs_r),
                               rtol=1e-2, atol=1e-2)

    # --- full AERCA forward ---
    outs = aerca_forward(x, enc_params, dec_params, dec_prev_params, WINDOW,
                         add_u=True)
    outs = jax.block_until_ready(outs)

    nexts_hat, nexts, enc_c, dec_c, prev_c, kl, us = outs
    assert nexts_hat.shape == (T - 2 * WINDOW, NUM_VARS)
    assert nexts.shape == (T - 2 * WINDOW, NUM_VARS)
    assert enc_c.shape == (T - WINDOW, WINDOW, NUM_VARS, NUM_VARS)
    assert dec_c.shape == (T - 2 * WINDOW, WINDOW, NUM_VARS, NUM_VARS)
    assert prev_c.shape == (T - 2 * WINDOW, WINDOW, NUM_VARS, NUM_VARS)
    assert us.shape == (T - WINDOW, NUM_VARS)
    assert kl.shape == ()

    print("KERNEL_OK")
</pallas_src>

<mosaic_0001>
module attributes {stable_mosaic.version = 11 : i64} {
  func.func @senngc_kernel(%arg0: i32, %arg1: memref<1x40x16xf32, #tpu.memory_space<vmem>>, %arg2: memref<1x16x128xf32, #tpu.memory_space<vmem>>, %arg3: memref<1x1x128xf32, #tpu.memory_space<vmem>>, %arg4: memref<1x1x128x128xf32, #tpu.memory_space<vmem>>, %arg5: memref<1x1x1x128xf32, #tpu.memory_space<vmem>>, %arg6: memref<1x128x64xf32, #tpu.memory_space<vmem>>, %arg7: memref<1x1x64xf32, #tpu.memory_space<vmem>>, %arg8: memref<16x64xf32, #tpu.memory_space<vmem>>, %arg9: memref<64x4xf32, #tpu.memory_space<vmem>>, %arg10: memref<1x40x128xf32, #tpu.memory_space<vmem>>) attributes {dimension_semantics = [#tpu.dimension_semantics<parallel>], iteration_bounds = array<i64: 1>, scalar_prefetch = 0 : i64, scratch_operands = 0 : i64, tpu.core_type = #tpu.core_type<tc>, window_params = [{transform_indices = @transform_0, window_bounds = array<i64: 1, 40, 16>}, {transform_indices = @transform_1, window_bounds = array<i64: 1, 16, 128>}, {transform_indices = @transform_2, window_bounds = array<i64: 1, 1, 128>}, {transform_indices = @transform_3, window_bounds = array<i64: 1, 1, 128, 128>}, {transform_indices = @transform_4, window_bounds = array<i64: 1, 1, 1, 128>}, {transform_indices = @transform_5, window_bounds = array<i64: 1, 128, 64>}, {transform_indices = @transform_6, window_bounds = array<i64: 1, 1, 64>}, {pipeline_mode = #tpu.pipeline_mode<synchronous>, transform_indices = @transform_7, window_bounds = array<i64: 16, 64>}, {pipeline_mode = #tpu.pipeline_mode<synchronous>, transform_indices = @transform_8, window_bounds = array<i64: 64, 4>}, {transform_indices = @transform_9, window_bounds = array<i64: 1, 40, 128>}]} {
    %c0 = arith.constant 0 : index
    %c0_0 = arith.constant 0 : index
    %c0_1 = arith.constant 0 : index
    %0 = vector.load %arg1[%c0, %c0_0, %c0_1] : memref<1x40x16xf32, #tpu.memory_space<vmem>>, vector<1x40x16xf32>
    %1 = vector.shape_cast %0 : vector<1x40x16xf32> to vector<40x16xf32>
    %c0_2 = arith.constant 0 : index
    %c0_3 = arith.constant 0 : index
    %c0_4 = arith.constant 0 : index
    %2 = vector.load %arg2[%c0_2, %c0_3, %c0_4] : memref<1x16x128xf32, #tpu.memory_space<vmem>>, vector<1x16x128xf32>
    %3 = vector.shape_cast %2 : vector<1x16x128xf32> to vector<16x128xf32>
    %cst = arith.constant dense<0.000000e+00> : vector<40x128xf32>
    %4 = tpu.matmul %1, %3, %cst {dimension_numbers = #tpu.dot_dimension_numbers<[1], [0], [0], [1], [0, 0, 1, 1], [], []>} : vector<40x16xf32>, vector<16x128xf32>, vector<40x128xf32> -> vector<40x128xf32>
    %c0_5 = arith.constant 0 : index
    %c0_6 = arith.constant 0 : index
    %c0_7 = arith.constant 0 : index
    %5 = vector.load %arg3[%c0_5, %c0_6, %c0_7] : memref<1x1x128xf32, #tpu.memory_space<vmem>>, vector<1x1x128xf32>
    %6 = vector.shape_cast %5 : vector<1x1x128xf32> to vector<1x128xf32>
    %7 = vector.broadcast %6 : vector<1x128xf32> to vector<40x128xf32>
    %8 = arith.addf %4, %7 : vector<40x128xf32>
    %cst_8 = arith.constant 0.000000e+00 : f32
    %9 = vector.broadcast %cst_8 : f32 to vector<40x128xf32>
    %10 = arith.maximumf %8, %9 : vector<40x128xf32>
    %c0_9 = arith.constant 0 : index
    %c0_10 = arith.constant 0 : index
    %c0_11 = arith.constant 0 : index
    %c0_12 = arith.constant 0 : index
    %11 = vector.load %arg4[%c0_9, %c0_10, %c0_11, %c0_12] : memref<1x1x128x128xf32, #tpu.memory_space<vmem>>, vector<1x1x128x128xf32>
    %12 = vector.shape_cast %11 : vector<1x1x128x128xf32> to vector<128x128xf32>
    %cst_13 = arith.constant dense<0.000000e+00> : vector<40x128xf32>
    %13 = tpu.matmul %10, %12, %cst_13 {dimension_numbers = #tpu.dot_dimension_numbers<[1], [0], [0], [1], [0, 0, 1, 1], [], []>} : vector<40x128xf32>, vector<128x128xf32>, vector<40x128xf32> -> vector<40x128xf32>
    %c0_14 = arith.constant 0 : index
    %c0_15 = arith.constant 0 : index
    %c0_16 = arith.constant 0 : index
    %c0_17 = arith.constant 0 : index
    %14 = vector.load %arg5[%c0_14, %c0_15, %c0_16, %c0_17] : memref<1x1x1x128xf32, #tpu.memory_space<vmem>>, vector<1x1x1x128xf32>
    %15 = vector.shape_cast %14 : vector<1x1x1x128xf32> to vector<1x128xf32>
    %16 = vector.broadcast %15 : vector<1x128xf32> to vector<40x128xf32>
    %17 = arith.addf %13, %16 : vector<40x128xf32>
    %cst_18 = arith.constant 0.000000e+00 : f32
    %18 = vector.broadcast %cst_18 : f32 to vector<40x128xf32>
    %19 = arith.maximumf %17, %18 : vector<40x128xf32>
    %c0_19 = arith.constant 0 : index
    %c0_20 = arith.constant 0 : index
    %c0_21 = arith.constant 0 : index
    %20 = vector.load %arg6[%c0_19, %c0_20, %c0_21] : memref<1x128x64xf32, #tpu.memory_space<vmem>>, vector<1x128x64xf32>
    %21 = vector.shape_cast %20 : vector<1x128x64xf32> to vector<128x64xf32>
    %cst_22 = arith.constant dense<0.000000e+00> : vector<40x64xf32>
    %22 = tpu.matmul %19, %21, %cst_22 {dimension_numbers = #tpu.dot_dimension_numbers<[1], [0], [0], [1], [0, 0, 1, 1], [], []>} : vector<40x128xf32>, vector<128x64xf32>, vector<40x64xf32> -> vector<40x64xf32>
    %c0_23 = arith.constant 0 : index
    %c0_24 = arith.constant 0 : index
    %c0_25 = arith.constant 0 : index
    %23 = vector.load %arg7[%c0_23, %c0_24, %c0_25] : memref<1x1x64xf32, #tpu.memory_space<vmem>>, vector<1x1x64xf32>
    %24 = vector.shape_cast %23 : vector<1x1x64xf32> to vector<1x64xf32>
    %25 = vector.broadcast %24 : vector<1x64xf32> to vector<40x64xf32>
    %26 = arith.addf %22, %25 : vector<40x64xf32>
    %c0_26 = arith.constant 0 : index
    %c0_27 = arith.constant 0 : index
    %27 = vector.load %arg8[%c0_26, %c0_27] : memref<16x64xf32, #tpu.memory_space<vmem>>, vector<16x64xf32>
    %cst_28 = arith.constant dense<0.000000e+00> : vector<40x64xf32>
    %28 = tpu.matmul %1, %27, %cst_28 {dimension_numbers = #tpu.dot_dimension_numbers<[1], [0], [0], [1], [0, 0, 1, 1], [], []>} : vector<40x16xf32>, vector<16x64xf32>, vector<40x64xf32> -> vector<40x64xf32>
    %29 = arith.mulf %26, %28 : vector<40x64xf32>
    %c0_29 = arith.constant 0 : index
    %c0_30 = arith.constant 0 : index
    %30 = vector.load %arg9[%c0_29, %c0_30] : memref<64x4xf32, #tpu.memory_space<vmem>>, vector<64x4xf32>
    %cst_31 = arith.constant dense<0.000000e+00> : vector<40x4xf32>
    %31 = tpu.matmul %29, %30, %cst_31 {dimension_numbers = #tpu.dot_dimension_numbers<[1], [0], [0], [1], [0, 0, 1, 1], [], []>} : vector<40x64xf32>, vector<64x4xf32>, vector<40x4xf32> -> vector<40x4xf32>
    %cst_32 = arith.constant 0.000000e+00 : f32
    %32 = vector.broadcast %cst_32 : f32 to vector<40x60xf32>
    %33 = tpu.concatenate %26, %31, %32 in 1 : vector<40x64xf32>, vector<40x4xf32>, vector<40x60xf32> -> vector<40x128xf32>
    %c0_33 = arith.constant 0 : index
    %c0_34 = arith.constant 0 : index
    %c0_35 = arith.constant 0 : index
    %34 = vector.load %arg10[%c0_33, %c0_34, %c0_35] : memref<1x40x128xf32, #tpu.memory_space<vmem>>, vector<1x40x128xf32>
    %35 = vector.shape_cast %34 : vector<1x40x128xf32> to vector<40x128xf32>
    %36 = vector.shape_cast %33 : vector<40x128xf32> to vector<1x40x128xf32>
    tpu.vector_store %arg10[%c0_33, %c0_34, %c0_35], %36 {strides = array<i32>} : memref<1x40x128xf32, #tpu.memory_space<vmem>>, vector<1x40x128xf32>,
    return
  }
  func.func @transform_0(%arg0: i32) -> (i32, i32, i32) {
    %c0_i32 = arith.constant 0 : i32
    %c0_i32_0 = arith.constant 0 : i32
    %c0_i32_1 = arith.constant 0 : i32
    return %arg0, %c0_i32, %c0_i32_0 : i32, i32, i32
  }
  func.func @transform_1(%arg0: i32) -> (i32, i32, i32) {
    %c0_i32 = arith.constant 0 : i32
    %c0_i32_0 = arith.constant 0 : i32
    %c0_i32_1 = arith.constant 0 : i32
    return %arg0, %c0_i32, %c0_i32_0 : i32, i32, i32
  }
  func.func @transform_2(%arg0: i32) -> (i32, i32, i32) {
    %c0_i32 = arith.constant 0 : i32
    %c0_i32_0 = arith.constant 0 : i32
    %c0_i32_1 = arith.constant 0 : i32
    return %arg0, %c0_i32, %c0_i32_0 : i32, i32, i32
  }
  func.func @transform_3(%arg0: i32) -> (i32, i32, i32, i32) {
    %c0_i32 = arith.constant 0 : i32
    %c0_i32_0 = arith.constant 0 : i32
    %c0_i32_1 = arith.constant 0 : i32
    %c0_i32_2 = arith.constant 0 : i32
    return %arg0, %c0_i32, %c0_i32_0, %c0_i32_1 : i32, i32, i32, i32
  }
  func.func @transform_4(%arg0: i32) -> (i32, i32, i32, i32) {
    %c0_i32 = arith.constant 0 : i32
    %c0_i32_0 = arith.constant 0 : i32
    %c0_i32_1 = arith.constant 0 : i32
    %c0_i32_2 = arith.constant 0 : i32
    return %arg0, %c0_i32, %c0_i32_0, %c0_i32_1 : i32, i32, i32, i32
  }
  func.func @transform_5(%arg0: i32) -> (i32, i32, i32) {
    %c0_i32 = arith.constant 0 : i32
    %c0_i32_0 = arith.constant 0 : i32
    %c0_i32_1 = arith.constant 0 : i32
    return %arg0, %c0_i32, %c0_i32_0 : i32, i32, i32
  }
  func.func @transform_6(%arg0: i32) -> (i32, i32, i32) {
    %c0_i32 = arith.constant 0 : i32
    %c0_i32_0 = arith.constant 0 : i32
    %c0_i32_1 = arith.constant 0 : i32
    return %arg0, %c0_i32, %c0_i32_0 : i32, i32, i32
  }
  func.func @transform_7(%arg0: i32) -> (i32, i32) {
    %c0_i32 = arith.constant 0 : i32
    %c0_i32_0 = arith.constant 0 : i32
    %c0_i32_1 = arith.constant 0 : i32
    return %c0_i32, %c0_i32_0 : i32, i32
  }
  func.func @transform_8(%arg0: i32) -> (i32, i32) {
    %c0_i32 = arith.constant 0 : i32
    %c0_i32_0 = arith.constant 0 : i32
    %c0_i32_1 = arith.constant 0 : i32
    return %c0_i32, %c0_i32_0 : i32, i32
  }
  func.func @transform_9(%arg0: i32) -> (i32, i32, i32) {
    %c0_i32 = arith.constant 0 : i32
    %c0_i32_0 = arith.constant 0 : i32
    %c0_i32_1 = arith.constant 0 : i32
    return %arg0, %c0_i32, %c0_i32_0 : i32, i32, i32
  }
}

</mosaic_0001>

<llo_original>
// kernel: tpu_custom_call.1
$region0: #{tpu_custom_call.1}
  #allocation0 [shape = 'u32[]', space=smem, size = 0x4, offset = 0x4, fixed_abs, tag = 'smem constant byte address 0x4 - core index']
  #allocation1 [shape = 'u32[72,128]{1,0:T(1,128)}', space=vmem, size = 0x9000, scoped, tag = 'internal scratch']
  %s0 = inlined_call_operand.vmem [shape: f32[1,40,16], index: 0, kind: input, shape index: {}]
  %s1 = inlined_call_operand.vmem [shape: f32[1,16,128], index: 1, kind: input, shape index: {}]
  %s2 = inlined_call_operand.vmem [shape: f32[1,1,128], index: 2, kind: input, shape index: {}]
  %s3 = inlined_call_operand.vmem [shape: f32[1,1,128,128], index: 3, kind: input, shape index: {}]
  %s4 = inlined_call_operand.vmem [shape: f32[1,1,1,128], index: 4, kind: input, shape index: {}]
  %s5 = inlined_call_operand.vmem [shape: f32[1,128,64], index: 5, kind: input, shape index: {}]
  %s6 = inlined_call_operand.vmem [shape: f32[1,1,64], index: 6, kind: input, shape index: {}]
  %s7 = inlined_call_operand.vmem [shape: f32[16,64], index: 7, kind: input, shape index: {}]
  %s8 = inlined_call_operand.vmem [shape: f32[64,4], index: 8, kind: input, shape index: {}]
  %s9 = inlined_call_operand.hbm [shape: f32[1,40,128], index: 9, kind: output, shape index: {}]
  %s10 = sld [smem:[#allocation0]]
  $region46: #{tpu_custom_call.1} parent=0
    _
  %s12 = ssub.s32 1, %s10
  %s13 = scalar_select 0, %s12, %s10
  $region1: #{tpu_custom_call.1} parent=0
    #allocation2 [shape = 'u8[20480]{0}', space=vmem, size = 0x5000, scoped, tag = 'output window, operand 0, single buffered']
    #allocation3 [shape = 's32[1]{0}', space=sflag, size = 0x4, scoped, tag = 'scoped memory for tpu_custom_call.1']
    %14 = vsyncpa [#allocation3], 0
    // Predicated region
    $region2: #{tpu_custom_call.1} parent=1 // pred_check
      _
    $region3: #{tpu_custom_call.1} parent=1 // pred_check_branch
      %16 = sbr.rel (0) target = $region5
    $region4: #{tpu_custom_call.1} parent=1 // pred_region
      _
    $region5: #{tpu_custom_call.1} parent=1 // pred_fallthru
      _
    // Predicated region
    $region6: #{tpu_custom_call.1} parent=1 // pred_check
      _
    $region7: #{tpu_custom_call.1} parent=1 // pred_check_branch
      %18 = sbr.rel (0) target = $region9
    $region8: #{tpu_custom_call.1} parent=1 // pred_region
      _
    $region9: #{tpu_custom_call.1} parent=1 // pred_fallthru
      _
    // Predicated region
    $region10: #{tpu_custom_call.1} parent=1 // pred_check
      _
    $region11: #{tpu_custom_call.1} parent=1 // pred_check_branch
      %20 = sbr.rel (0) target = $region13
    $region12: #{tpu_custom_call.1} parent=1 // pred_region
      _
    $region13: #{tpu_custom_call.1} parent=1 // pred_fallthru
      _
    // Predicated region
    $region14: #{tpu_custom_call.1} parent=1 // pred_check
      _
    $region15: #{tpu_custom_call.1} parent=1 // pred_check_branch
      %22 = sbr.rel (0) target = $region17
    $region16: #{tpu_custom_call.1} parent=1 // pred_region
      _
    $region17: #{tpu_custom_call.1} parent=1 // pred_fallthru
      _
    // Predicated region
    $region18: #{tpu_custom_call.1} parent=1 // pred_check
      _
    $region19: #{tpu_custom_call.1} parent=1 // pred_check_branch
      %24 = sbr.rel (0) target = $region21
    $region20: #{tpu_custom_call.1} parent=1 // pred_region
      _
    $region21: #{tpu_custom_call.1} parent=1 // pred_fallthru
      _
    // Predicated region
    $region22: #{tpu_custom_call.1} parent=1 // pred_check
      _
    $region23: #{tpu_custom_call.1} parent=1 // pred_check_branch
      %26 = sbr.rel (0) target = $region25
    $region24: #{tpu_custom_call.1} parent=1 // pred_region
      _
    $region25: #{tpu_custom_call.1} parent=1 // pred_fallthru
      _
    // Predicated region
    $region26: #{tpu_custom_call.1} parent=1 // pred_check
      _
    $region27: #{tpu_custom_call.1} parent=1 // pred_check_branch
      %28 = sbr.rel (0) target = $region29
    $region28: #{tpu_custom_call.1} parent=1 // pred_region
      _
    $region29: #{tpu_custom_call.1} parent=1 // pred_fallthru
      _
    // Predicated region
    $region30: #{tpu_custom_call.1} parent=1 // pred_check
      _
    $region31: #{tpu_custom_call.1} parent=1 // pred_check_branch
      %30 = sbr.rel (0) target = $region33
    $region32: #{tpu_custom_call.1} parent=1 // pred_region
      _
    $region33: #{tpu_custom_call.1} parent=1 // pred_fallthru
      _
    // Predicated region
    $region34: #{tpu_custom_call.1} parent=1 // pred_check
      _
    $region35: #{tpu_custom_call.1} parent=1 // pred_check_branch
      %32 = sbr.rel (0) target = $region37
    $region36: #{tpu_custom_call.1} parent=1 // pred_region
      _
    $region37: #{tpu_custom_call.1} parent=1 // pred_fallthru
      _
    %v33 = vld [vmem:[%s0] sm:$0xff]
    %v34 = vld [vmem:[%s0 + $0x8] sm:$0xff]
    %v35 = vld [vmem:[%s0 + $0x10] sm:$0xff]
    %v36 = vld [vmem:[%s0 + $0x18] sm:$0xff]
    %v37 = vld [vmem:[%s0 + $0x20] sm:$0xff]
    %v38 = vld [vmem:[%s1] sm:$0xff]
    %v39 = vld [vmem:[%s1 + $0x8] sm:$0xff]
    %v40 = vld [vmem:[%s2] sm:$0x1]
    %v42 = vperm.slane %v40, 0
    %vm44 = vcmask 130048
    %v46 = vsel %vm44, %v33, 0
    %v49 = vsel %vm44, %v34, 0
    %v52 = vsel %vm44, %v35, 0
    %v55 = vsel %vm44, %v36, 0
    %v58 = vsel %vm44, %v37, 0
    %60 = vmatpush.msra.mxu0 0.0
    %61 = vmatpush.msra.mxu0 0.0
    %62 = vmatpush.msra.mxu0 0.0
    %63 = vmatpush.msra.mxu0 0.0
    %64 = vmatpush.msra.mxu0 0.0
    %65 = vmatpush.msra.mxu0 0.0
    %66 = vmatpush.msra.mxu0 0.0
    %67 = vmatpush.msra.mxu0 0.0
    %68 = vmatpush.msra.mxu0 0.0
    %69 = vmatpush.msra.mxu0 0.0
    %70 = vmatpush.msra.mxu0 0.0
    %71 = vmatpush.msra.mxu0 0.0
    %72 = vmatpush.msra.mxu0 0.0
    %73 = vmatpush.msra.mxu0 0.0
    %74 = vmatpush.msra.mxu0 %v39
    %75 = vmatpush.msra.mxu0 %v38
    %76 = vmatmul.f32.gmra.mxu0 %v46
    %v77 = vpop.f32.mrf.mxu0
    %v78 = vadd.f32 %v42, %v77
    %79 = vmatmul.f32.gmra.mxu0 %v49
    %v80 = vpop.f32.mrf.mxu0
    %v81 = vadd.f32 %v42, %v80
    %82 = vmatmul.f32.gmra.mxu0 %v52
    %v83 = vpop.f32.mrf.mxu0
    %v84 = vadd.f32 %v42, %v83
    %85 = vmatmul.f32.gmra.mxu0 %v55
    %v86 = vpop.f32.mrf.mxu0
    %v87 = vadd.f32 %v42, %v86
    %88 = vmatmul.f32.gmra.mxu0 %v58
    %v89 = vpop.f32.mrf.mxu0
    %v90 = vadd.f32 %v42, %v89
    %91 = vdwg.mxu0
    %v92 = vmax.f32 %v78, 0.0
    %v93 = vmax.f32 %v81, 0.0
    %v94 = vmax.f32 %v84, 0.0
    %v95 = vmax.f32 %v87, 0.0
    %v96 = vmax.f32 %v90, 0.0
    %v97 = vld [vmem:[%s3] sm:$0xff]
    %v98 = vld [vmem:[%s3 + $0x8] sm:$0xff]
    %v99 = vld [vmem:[%s3 + $0x10] sm:$0xff]
    %v100 = vld [vmem:[%s3 + $0x18] sm:$0xff]
    %v101 = vld [vmem:[%s3 + $0x20] sm:$0xff]
    %v102 = vld [vmem:[%s3 + $0x28] sm:$0xff]
    %v103 = vld [vmem:[%s3 + $0x30] sm:$0xff]
    %v104 = vld [vmem:[%s3 + $0x38] sm:$0xff]
    %v105 = vld [vmem:[%s3 + $0x40] sm:$0xff]
    %v106 = vld [vmem:[%s3 + $0x48] sm:$0xff]
    %v107 = vld [vmem:[%s3 + $0x50] sm:$0xff]
    %v108 = vld [vmem:[%s3 + $0x58] sm:$0xff]
    %v109 = vld [vmem:[%s3 + $0x60] sm:$0xff]
    %v110 = vld [vmem:[%s3 + $0x68] sm:$0xff]
    %v111 = vld [vmem:[%s3 + $0x70] sm:$0xff]
    %v112 = vld [vmem:[%s3 + $0x78] sm:$0xff]
    %v113 = vld [vmem:[%s4] sm:$0x1]
    %v115 = vperm.slane %v113, 0
    %117 = vmatpush.msra.mxu0 %v112
    %118 = vmatpush.msra.mxu0 %v111
    %119 = vmatpush.msra.mxu0 %v110
    %120 = vmatpush.msra.mxu0 %v109
    %121 = vmatpush.msra.mxu0 %v108
    %122 = vmatpush.msra.mxu0 %v107
    %123 = vmatpush.msra.mxu0 %v106
    %124 = vmatpush.msra.mxu0 %v105
    %125 = vmatpush.msra.mxu0 %v104
    %126 = vmatpush.msra.mxu0 %v103
    %127 = vmatpush.msra.mxu0 %v102
    %128 = vmatpush.msra.mxu0 %v101
    %129 = vmatpush.msra.mxu0 %v100
    %130 = vmatpush.msra.mxu0 %v99
    %131 = vmatpush.msra.mxu0 %v98
    %132 = vmatpush.msra.mxu0 %v97
    %133 = vmatmul.f32.gmra.mxu0 %v92
    %v134 = vpop.f32.mrf.mxu0
    %v135 = vadd.f32 %v115, %v134
    %136 = vmatmul.f32.gmra.mxu0 %v93
    %v137 = vpop.f32.mrf.mxu0
    %v138 = vadd.f32 %v115, %v137
    %139 = vmatmul.f32.gmra.mxu0 %v94
    %v140 = vpop.f32.mrf.mxu0
    %v141 = vadd.f32 %v115, %v140
    %142 = vmatmul.f32.gmra.mxu0 %v95
    %v143 = vpop.f32.mrf.mxu0
    %v144 = vadd.f32 %v115, %v143
    %145 = vmatmul.f32.gmra.mxu0 %v96
    %v146 = vpop.f32.mrf.mxu0
    %v147 = vadd.f32 %v115, %v146
    %148 = vdwg.mxu0
    %v149 = vmax.f32 %v135, 0.0
    %v150 = vmax.f32 %v138, 0.0
    %v151 = vmax.f32 %v141, 0.0
    %v152 = vmax.f32 %v144, 0.0
    %v153 = vmax.f32 %v147, 0.0
    %v154 = vld [vmem:[%s5] sm:$0xff]
    %v155 = vld [vmem:[%s5 + $0x8] sm:$0xff]
    %v156 = vld [vmem:[%s5 + $0x10] sm:$0xff]
    %v157 = vld [vmem:[%s5 + $0x18] sm:$0xff]
    %v158 = vld [vmem:[%s5 + $0x20] sm:$0xff]
    %v159 = vld [vmem:[%s5 + $0x28] sm:$0xff]
    %v160 = vld [vmem:[%s5 + $0x30] sm:$0xff]
    %v161 = vld [vmem:[%s5 + $0x38] sm:$0xff]
    %v162 = vld [vmem:[%s5 + $0x40] sm:$0xff]
    %v163 = vld [vmem:[%s5 + $0x48] sm:$0xff]
    %v164 = vld [vmem:[%s5 + $0x50] sm:$0xff]
    %v165 = vld [vmem:[%s5 + $0x58] sm:$0xff]
    %v166 = vld [vmem:[%s5 + $0x60] sm:$0xff]
    %v167 = vld [vmem:[%s5 + $0x68] sm:$0xff]
    %v168 = vld [vmem:[%s5 + $0x70] sm:$0xff]
    %v169 = vld [vmem:[%s5 + $0x78] sm:$0xff]
    %v170 = vld [vmem:[%s6] sm:$0x1]
    %v172 = vperm.slane %v170, 0
    %174 = vmatpush.msra.mxu0 %v169
    %175 = vmatpush.msra.mxu0 %v168
    %176 = vmatpush.msra.mxu0 %v167
    %177 = vmatpush.msra.mxu0 %v166
    %178 = vmatpush.msra.mxu0 %v165
    %179 = vmatpush.msra.mxu0 %v164
    %180 = vmatpush.msra.mxu0 %v163
    %181 = vmatpush.msra.mxu0 %v162
    %182 = vmatpush.msra.mxu0 %v161
    %183 = vmatpush.msra.mxu0 %v160
    %184 = vmatpush.msra.mxu0 %v159
    %185 = vmatpush.msra.mxu0 %v158
    %186 = vmatpush.msra.mxu0 %v157
    %187 = vmatpush.msra.mxu0 %v156
    %188 = vmatpush.msra.mxu0 %v155
    %189 = vmatpush.msra.mxu0 %v154
    %190 = vmatmul.f32.gmra.mxu0 %v149
    %v191 = vpop.f32.mrf.mxu0
    %v192 = vadd.f32 %v172, %v191
    %193 = vmatmul.f32.gmra.mxu0 %v150
    %v194 = vpop.f32.mrf.mxu0
    %v195 = vadd.f32 %v172, %v194
    %196 = vmatmul.f32.gmra.mxu0 %v151
    %v197 = vpop.f32.mrf.mxu0
    %v198 = vadd.f32 %v172, %v197
    %199 = vmatmul.f32.gmra.mxu0 %v152
    %v200 = vpop.f32.mrf.mxu0
    %v201 = vadd.f32 %v172, %v200
    %202 = vmatmul.f32.gmra.mxu0 %v153
    %v203 = vpop.f32.mrf.mxu0
    %v204 = vadd.f32 %v172, %v203
    %205 = vdwg.mxu0
    %v206 = vld [vmem:[%s7] sm:$0xff]
    %v207 = vld [vmem:[%s7 + $0x8] sm:$0xff]
    %208 = vmatpush.msra.mxu0 0.0
    %209 = vmatpush.msra.mxu0 0.0
    %210 = vmatpush.msra.mxu0 0.0
    %211 = vmatpush.msra.mxu0 0.0
    %212 = vmatpush.msra.mxu0 0.0
    %213 = vmatpush.msra.mxu0 0.0
    %214 = vmatpush.msra.mxu0 0.0
    %215 = vmatpush.msra.mxu0 0.0
    %216 = vmatpush.msra.mxu0 0.0
    %217 = vmatpush.msra.mxu0 0.0
    %218 = vmatpush.msra.mxu0 0.0
    %219 = vmatpush.msra.mxu0 0.0
    %220 = vmatpush.msra.mxu0 0.0
    %221 = vmatpush.msra.mxu0 0.0
    %222 = vmatpush.msra.mxu0 %v207
    %223 = vmatpush.msra.mxu0 %v206
    %224 = vmatmul.f32.gmra.mxu0 %v46
    %v225 = vpop.f32.mrf.mxu0
    %v226 = vadd.f32 0.0, %v225
    %227 = vmatmul.f32.gmra.mxu0 %v49
    %v228 = vpop.f32.mrf.mxu0
    %v229 = vadd.f32 0.0, %v228
    %230 = vmatmul.f32.gmra.mxu0 %v52
    %v231 = vpop.f32.mrf.mxu0
    %v232 = vadd.f32 0.0, %v231
    %233 = vmatmul.f32.gmra.mxu0 %v55
    %v234 = vpop.f32.mrf.mxu0
    %v235 = vadd.f32 0.0, %v234
    %236 = vmatmul.f32.gmra.mxu0 %v58
    %v237 = vpop.f32.mrf.mxu0
    %v238 = vadd.f32 0.0, %v237
    %239 = vdwg.mxu0
    %v240 = vmul.f32 %v192, %v226
    %v241 = vmul.f32 %v195, %v229
    %v242 = vmul.f32 %v198, %v232
    %v243 = vmul.f32 %v201, %v235
    %v244 = vmul.f32 %v204, %v238
    %v245 = vld [vmem:[%s8] sm:$0xff]
    %v246 = vld [vmem:[%s8 + $0x8] sm:$0xff]
    %v247 = vld [vmem:[%s8 + $0x10] sm:$0xff]
    %v248 = vld [vmem:[%s8 + $0x18] sm:$0xff]
    %v249 = vld [vmem:[%s8 + $0x20] sm:$0xff]
    %v250 = vld [vmem:[%s8 + $0x28] sm:$0xff]
    %v251 = vld [vmem:[%s8 + $0x30] sm:$0xff]
    %v252 = vld [vmem:[%s8 + $0x38] sm:$0xff]
    %vm253 = vcmask 523264
    %v255 = vsel %vm253, %v240, 0
    %v258 = vsel %vm253, %v241, 0
    %v261 = vsel %vm253, %v242, 0
    %v264 = vsel %vm253, %v243, 0
    %v267 = vsel %vm253, %v244, 0
    %269 = vmatpush.msra.mxu0 0.0
    %270 = vmatpush.msra.mxu0 0.0
    %271 = vmatpush.msra.mxu0 0.0
    %272 = vmatpush.msra.mxu0 0.0
    %273 = vmatpush.msra.mxu0 0.0
    %274 = vmatpush.msra.mxu0 0.0
    %275 = vmatpush.msra.mxu0 0.0
    %276 = vmatpush.msra.mxu0 0.0
    %277 = vmatpush.msra.mxu0 %v252
    %278 = vmatpush.msra.mxu0 %v251
    %279 = vmatpush.msra.mxu0 %v250
    %280 = vmatpush.msra.mxu0 %v249
    %281 = vmatpush.msra.mxu0 %v248
    %282 = vmatpush.msra.mxu0 %v247
    %283 = vmatpush.msra.mxu0 %v246
    %284 = vmatpush.msra.mxu0 %v245
    %285 = vmatmul.f32.gmra.mxu0 %v255
    %v286 = vpop.f32.mrf.mxu0
    %v287 = vadd.f32 0.0, %v286
    %288 = vmatmul.f32.gmra.mxu0 %v258
    %v289 = vpop.f32.mrf.mxu0
    %v290 = vadd.f32 0.0, %v289
    %291 = vmatmul.f32.gmra.mxu0 %v261
    %v292 = vpop.f32.mrf.mxu0
    %v293 = vadd.f32 0.0, %v292
    %294 = vmatmul.f32.gmra.mxu0 %v264
    %v295 = vpop.f32.mrf.mxu0
    %v296 = vadd.f32 0.0, %v295
    %297 = vmatmul.f32.gmra.mxu0 %v267
    %v298 = vpop.f32.mrf.mxu0
    %v299 = vadd.f32 0.0, %v298
    %300 = vdwg.mxu0
    %306 = vrot.lane.b32.xlu0 %v287, 64
    %v307 = vpop.permute.xlu0 %306
    %308 = vrot.lane.b32.xlu0 %v290, 64
    %v309 = vpop.permute.xlu0 %308
    %310 = vrot.lane.b32.xlu0 %v293, 64
    %v311 = vpop.permute.xlu0 %310
    %312 = vrot.lane.b32.xlu0 %v296, 64
    %v313 = vpop.permute.xlu0 %312
    %314 = vrot.lane.b32.xlu0 %v299, 64
    %v315 = vpop.permute.xlu0 %314
    %v321 = vsel %vm253, %v192, %v307
    %v322 = vsel %vm253, %v195, %v309
    %v323 = vsel %vm253, %v198, %v311
    %v324 = vsel %vm253, %v201, %v313
    %v325 = vsel %vm253, %v204, %v315
    %vm326 = vcmask 556032
    %v327 = vsel %vm326, %v321, 0.0
    %v328 = vsel %vm326, %v322, 0.0
    %v329 = vsel %vm326, %v323, 0.0
    %v330 = vsel %vm326, %v324, 0.0
    %v331 = vsel %vm326, %v325, 0.0
    %332 = vst [vmem:[#allocation2] sm:$0xff] %v327
    %333 = vst [vmem:[#allocation2 + $0x8] sm:$0xff] %v328
    %334 = vst [vmem:[#allocation2 + $0x10] sm:$0xff] %v329
    %335 = vst [vmem:[#allocation2 + $0x18] sm:$0xff] %v330
    %336 = vst [vmem:[#allocation2 + $0x20] sm:$0xff] %v331
    // Predicated region
    $region38: #{tpu_custom_call.1} parent=1 // pred_check
      _
    $region39: #{tpu_custom_call.1} parent=1 // pred_check_branch
      %338 = sbr.rel (0) target = $region41
    $region40: #{tpu_custom_call.1} parent=1 // pred_region
      %340 = vsyncadd [#allocation3], 0
      %s341 = sshll.u32 [#allocation2], 4
      %s342 = int_to_ptr.vmem [resolvable:$true] %s341
      %s343 = sshll.u32 %s9, 4
      %s344 = int_to_ptr.hbm [resolvable:$true] %s343
      %349 = dma.vmem_to_hbm [thread:$0]  %s342, 640, %s344, [#allocation3], 128, 128, 8
    $region41: #{tpu_custom_call.1} parent=1 // pred_fallthru
      _
    // Predicated region
    $region42: #{tpu_custom_call.1} parent=1 // pred_check
      _
    $region43: #{tpu_custom_call.1} parent=1 // pred_check_branch
      %351 = sbr.rel (0) target = $region45
    $region44: #{tpu_custom_call.1} parent=1 // pred_region
      %353 = dma.done [#allocation3], 640
    $region45: #{tpu_custom_call.1} parent=1 // pred_fallthru
      _
    %354 = vsyncpa [#allocation3], 1

</llo_original>
